<compile_context>
chip_gen: v6e
topology: v6e:2x2x1
jax: 0.10.0
libtpu: 0.0.40
codegen_flags: <defaults>
</compile_context>

<pallas_src>
import functools

import jax
import jax.numpy as jnp
from jax.experimental import pallas as pl
from jax.experimental.pallas import tpu as pltpu

EPS = 1e-5
LANE = 128
SUBLANE = 8
_SMALL_N_LANE_DENSE = 1024   # below this, narrow head emits a lane-dense slab

# Row indices inside the packed (16, W) parameter stack.
_ROW_B1, _ROW_G1, _ROW_BE1 = 0, 1, 2
_ROW_B2, _ROW_G2, _ROW_BE2 = 3, 4, 5
_ROW_B3, _ROW_G3, _ROW_BE3 = 6, 7, 8
_ROW_B4, _ROW_W4 = 9, 10
_N_PARAM_ROWS = 16           # 11 used, padded up to a sublane multiple


def _round_up(x, m):
    return (x + m - 1) // m * m


def _padded_vmem_bytes(shape, dtype):
    """(sublane, 128)-tile-padded VMEM footprint of a 1-D / 2-D array."""
    itemsize = jnp.dtype(dtype).itemsize
    sub = max(SUBLANE, 32 // itemsize)        # 8 for f32, 16 for bf16
    r, c = (1, shape[0]) if len(shape) == 1 else shape
    return _round_up(r, sub) * _round_up(c, LANE) * itemsize


def mlp_decoder_kernel(*refs, hidden_dim, out_dim, narrow_head):
    """Whole MLPDecoder forward in one kernel (all tensors fit in VMEM)."""
    if narrow_head:
        x_ref, w1_ref, w2_ref, w3_ref, p_ref, out_ref = refs
        w4_ref = None
    else:
        x_ref, w1_ref, w2_ref, w3_ref, w4_ref, p_ref, out_ref = refs

    def fc_relu_bn(h_mxu, w_ref, row_b, row_g, row_be, width):
        # fc (bf16 MXU inputs, f32 accumulation) -> bias -> relu
        z = jnp.dot(h_mxu, w_ref[...], preferred_element_type=jnp.float32)
        z = jnp.maximum(z + p_ref[row_b:row_b + 1, :width], 0.0)
        # BatchNorm1d (training mode): two-pass variance for numerical
        # stability, folded into a single scale/shift; rsqrt -> EUP slot.
        mu = jnp.mean(z, axis=0, keepdims=True)
        var = jnp.mean((z - mu) ** 2, axis=0, keepdims=True)
        a = p_ref[row_g:row_g + 1, :width] * jax.lax.rsqrt(var + EPS)
        c = p_ref[row_be:row_be + 1, :width] - a * mu
        return a * z + c

    h = fc_relu_bn(x_ref[...], w1_ref, _ROW_B1, _ROW_G1, _ROW_BE1, hidden_dim)
    h = fc_relu_bn(h.astype(jnp.bfloat16), w2_ref,
                   _ROW_B2, _ROW_G2, _ROW_BE2, hidden_dim)
    h = fc_relu_bn(h.astype(jnp.bfloat16), w3_ref,
                   _ROW_B3, _ROW_G3, _ROW_BE3, out_dim)

    if narrow_head:
        # fc4 with out_features == 1: f32 VPU multiply + lane reduce; no MXU.
        w4_row = p_ref[_ROW_W4:_ROW_W4 + 1, :out_dim]      # (1, out_dim) f32
        b4 = p_ref[_ROW_B4:_ROW_B4 + 1, 0:1]                # (1, 1)
        s = jnp.sum(h * w4_row, axis=-1, keepdims=True) + b4
        if out_ref.shape[1] == 1:
            # large N: write the narrow column directly (minimal writeback)
            out_ref[...] = s.astype(out_ref.dtype)
        else:
            # small N: lane-dense slab -> unmasked stores; wrapper slices back
            out_ref[...] = jnp.broadcast_to(s, out_ref.shape).astype(out_ref.dtype)
    else:
        b4 = p_ref[_ROW_B4:_ROW_B4 + 1, :out_ref.shape[1]]
        out = jnp.dot(h.astype(jnp.bfloat16), w4_ref[...],
                      preferred_element_type=jnp.float32) + b4
        out_ref[...] = out.astype(out_ref.dtype)


def mlp_decoder(x, params):
    """params: dict with w1,b1,g1,be1, w2,..., w4,b4 (biases/affine as (1,F))."""
    n, in_dim = x.shape
    hidden_dim = params["w1"].shape[1]
    out_dim, binary = params["w4"].shape
    narrow_head = (binary == 1)

    # ---- pack the 10 tiny (1,F) vectors (+ narrow fc4 column) into one stack
    stack_w = _round_up(max(hidden_dim, out_dim, binary), LANE)

    def row(v):
        v = jnp.asarray(v, jnp.float32).reshape(-1)
        return jnp.pad(v, (0, stack_w - v.shape[0]))

    rows = [row(params[k]) for k in
            ("b1", "g1", "be1", "b2", "g2", "be2", "b3", "g3", "be3", "b4")]
    if narrow_head:
        rows.append(row(params["w4"].reshape(-1)))   # fc4 column as one row
    else:
        rows.append(jnp.zeros((stack_w,), jnp.float32))
    param_stack = jnp.pad(jnp.stack(rows),
                          ((0, _N_PARAM_ROWS - len(rows)), (0, 0)))

    # ---- bf16 MXU inputs (BN/ReLU elementwise math stays f32 in the kernel)
    xb = x.astype(jnp.bfloat16)
    w1 = params["w1"].astype(jnp.bfloat16)
    w2 = params["w2"].astype(jnp.bfloat16)
    w3 = params["w3"].astype(jnp.bfloat16)

    if narrow_head:
        out_w = LANE if n <= _SMALL_N_LANE_DENSE else 1
        slice_to = 1 if out_w != 1 else None
        args = (xb, w1, w2, w3, param_stack)
    else:
        pad_bin = _round_up(binary, LANE)
        w4 = jnp.pad(params["w4"],
                     ((0, 0), (0, pad_bin - binary))).astype(jnp.bfloat16)
        out_w = pad_bin
        slice_to = binary if pad_bin != binary else None
        args = (xb, w1, w2, w3, w4, param_stack)

    vmem_spec = pl.BlockSpec(memory_space=pltpu.MemorySpace.VMEM)

    # ---- VMEM budget from (8,128)-padded resident buffers (gridless call ->
    # no double buffering) plus an estimate for the f32 intermediates.
    in_bytes = sum(_padded_vmem_bytes(a.shape, a.dtype) for a in args)
    out_bytes = _padded_vmem_bytes((n, out_w), jnp.float32)
    feat_pad = _round_up(max(in_dim, hidden_dim, out_dim), LANE)
    interm_bytes = 8 * _round_up(n, SUBLANE) * feat_pad * 4
    vmem_limit = in_bytes + out_bytes + interm_bytes + (8 << 20)

    out = pl.pallas_call(
        functools.partial(mlp_decoder_kernel,
                          hidden_dim=hidden_dim, out_dim=out_dim,
                          narrow_head=narrow_head),
        out_shape=jax.ShapeDtypeStruct((n, out_w), jnp.float32),
        in_specs=[vmem_spec] * len(args),
        out_specs=vmem_spec,
        compiler_params=pltpu.CompilerParams(vmem_limit_bytes=int(vmem_limit)),
    )(*args)
    if slice_to is not None:
        out = out[:, :slice_to]
    return out


def make_params(key, in_dim, hidden_dim, out_dim, binary):
    ks = jax.random.split(key, 8)

    def lin(kw, kb, fan_in, fan_out):
        bound = 1.0 / jnp.sqrt(fan_in)
        w = jax.random.uniform(kw, (fan_in, fan_out), jnp.float32, -bound, bound)
        b = jax.random.uniform(kb, (1, fan_out), jnp.float32, -bound, bound)
        return w, b

    w1, b1 = lin(ks[0], ks[1], in_dim, hidden_dim)
    w2, b2 = lin(ks[2], ks[3], hidden_dim, hidden_dim)
    w3, b3 = lin(ks[4], ks[5], hidden_dim, out_dim)
    w4, b4 = lin(ks[6], ks[7], out_dim, binary)

    return {
        "w1": w1, "b1": b1,
        "g1": jnp.ones((1, hidden_dim), jnp.float32),
        "be1": jnp.zeros((1, hidden_dim), jnp.float32),
        "w2": w2, "b2": b2,
        "g2": jnp.ones((1, hidden_dim), jnp.float32),
        "be2": jnp.zeros((1, hidden_dim), jnp.float32),
        "w3": w3, "b3": b3,
        "g3": jnp.ones((1, out_dim), jnp.float32),
        "be3": jnp.zeros((1, out_dim), jnp.float32),
        "w4": w4, "b4": b4,
    }


def mlp_decoder_ref(x, p, *, match_kernel_precision=True):
    """Pure-JAX reference (training-mode BatchNorm); optionally mirrors the
    kernel's mixed precision (bf16 MXU inputs, f32 accumulate/elementwise)."""
    dt = jnp.bfloat16 if match_kernel_precision else jnp.float32

    def mm(a, w):
        return jnp.dot(a.astype(dt), w.astype(dt),
                       preferred_element_type=jnp.float32)

    def blk(h, w, b, g, be):
        z = jnp.maximum(mm(h, w) + b, 0.0)
        mu = jnp.mean(z, axis=0, keepdims=True)
        var = jnp.mean((z - mu) ** 2, axis=0, keepdims=True)
        return g * (z - mu) / jnp.sqrt(var + EPS) + be

    h = blk(x, p["w1"], p["b1"], p["g1"], p["be1"])
    h = blk(h, p["w2"], p["b2"], p["g2"], p["be2"])
    h = blk(h, p["w3"], p["b3"], p["g3"], p["be3"])
    if p["w4"].shape[1] == 1:
        return h @ p["w4"] + p["b4"]               # kernel's narrow head is f32
    return mm(h, p["w4"]) + p["b4"]


if __name__ == "__main__":
    key = jax.random.PRNGKey(0)
    kx, kp = jax.random.split(key)

    batch, in_dim, hidden_dim, out_dim, binary = 8, 32, 32, 16, 1

    x = jax.random.normal(kx, (batch, in_dim), jnp.float32)
    params = make_params(kp, in_dim, hidden_dim, out_dim, binary)

    out = mlp_decoder(x, params)
    out = jax.block_until_ready(out)

    ref = mlp_decoder_ref(x, params)
    assert out.shape == (batch, binary), out.shape
    assert jnp.allclose(out, ref, atol=1e-3, rtol=1e-3), "mismatch vs reference"

    print("KERNEL_OK")
</pallas_src>

<mosaic_0001>
module attributes {stable_mosaic.version = 11 : i64} {
  func.func @mlp_decoder_kernel(%arg0: memref<8x32xbf16, #tpu.memory_space<vmem>>, %arg1: memref<32x32xbf16, #tpu.memory_space<vmem>>, %arg2: memref<32x32xbf16, #tpu.memory_space<vmem>>, %arg3: memref<32x16xbf16, #tpu.memory_space<vmem>>, %arg4: memref<16x128xf32, #tpu.memory_space<vmem>>, %arg5: memref<8x128xf32, #tpu.memory_space<vmem>>) attributes {dimension_semantics = [], scalar_prefetch = 0 : i64, scratch_operands = 0 : i64, tpu.core_type = #tpu.core_type<tc>} {
    %c0 = arith.constant 0 : index
    %c0_0 = arith.constant 0 : index
    %0 = vector.load %arg0[%c0, %c0_0] : memref<8x32xbf16, #tpu.memory_space<vmem>>, vector<8x32xbf16>
    %c0_1 = arith.constant 0 : index
    %c0_2 = arith.constant 0 : index
    %1 = vector.load %arg1[%c0_1, %c0_2] : memref<32x32xbf16, #tpu.memory_space<vmem>>, vector<32x32xbf16>
    %cst = arith.constant dense<0.000000e+00> : vector<8x32xf32>
    %2 = tpu.matmul %0, %1, %cst {dimension_numbers = #tpu.dot_dimension_numbers<[1], [0], [0], [1], [0, 0, 1, 1], [], []>} : vector<8x32xbf16>, vector<32x32xbf16>, vector<8x32xf32> -> vector<8x32xf32>
    %c0_3 = arith.constant 0 : index
    %c0_4 = arith.constant 0 : index
    %3 = vector.load %arg4[%c0_3, %c0_4] : memref<16x128xf32, #tpu.memory_space<vmem>>, vector<1x32xf32>
    %4 = vector.broadcast %3 : vector<1x32xf32> to vector<8x32xf32>
    %5 = arith.addf %2, %4 : vector<8x32xf32>
    %cst_5 = arith.constant 0.000000e+00 : f32
    %6 = vector.broadcast %cst_5 : f32 to vector<8x32xf32>
    %7 = arith.maximumf %5, %6 : vector<8x32xf32>
    %cst_6 = arith.constant dense<0.000000e+00> : vector<32xf32>
    %8 = vector.multi_reduction <add>, %7, %cst_6 [0] : vector<8x32xf32> to vector<32xf32>
    %9 = vector.shape_cast %8 : vector<32xf32> to vector<1x32xf32>
    %cst_7 = arith.constant 8.000000e+00 : f32
    %10 = vector.broadcast %cst_7 : f32 to vector<1x32xf32>
    %11 = arith.divf %9, %10 : vector<1x32xf32>
    %12 = vector.broadcast %11 : vector<1x32xf32> to vector<8x32xf32>
    %13 = arith.subf %7, %12 : vector<8x32xf32>
    %14 = arith.mulf %13, %13 : vector<8x32xf32>
    %cst_8 = arith.constant dense<0.000000e+00> : vector<32xf32>
    %15 = vector.multi_reduction <add>, %14, %cst_8 [0] : vector<8x32xf32> to vector<32xf32>
    %16 = vector.shape_cast %15 : vector<32xf32> to vector<1x32xf32>
    %cst_9 = arith.constant 8.000000e+00 : f32
    %17 = vector.broadcast %cst_9 : f32 to vector<1x32xf32>
    %18 = arith.divf %16, %17 : vector<1x32xf32>
    %c1 = arith.constant 1 : index
    %c0_10 = arith.constant 0 : index
    %19 = vector.load %arg4[%c1, %c0_10] : memref<16x128xf32, #tpu.memory_space<vmem>>, vector<1x32xf32>
    %cst_11 = arith.constant 9.99999974E-6 : f32
    %20 = vector.broadcast %cst_11 : f32 to vector<1x32xf32>
    %21 = arith.addf %18, %20 : vector<1x32xf32>
    %22 = math.rsqrt %21 : vector<1x32xf32>
    %23 = arith.mulf %19, %22 : vector<1x32xf32>
    %c2 = arith.constant 2 : index
    %c0_12 = arith.constant 0 : index
    %24 = vector.load %arg4[%c2, %c0_12] : memref<16x128xf32, #tpu.memory_space<vmem>>, vector<1x32xf32>
    %25 = arith.mulf %23, %11 : vector<1x32xf32>
    %26 = arith.subf %24, %25 : vector<1x32xf32>
    %27 = vector.broadcast %23 : vector<1x32xf32> to vector<8x32xf32>
    %28 = arith.mulf %27, %7 : vector<8x32xf32>
    %29 = vector.broadcast %26 : vector<1x32xf32> to vector<8x32xf32>
    %30 = arith.addf %28, %29 : vector<8x32xf32>
    %31 = arith.truncf %30 : vector<8x32xf32> to vector<8x32xbf16>
    %c0_13 = arith.constant 0 : index
    %c0_14 = arith.constant 0 : index
    %32 = vector.load %arg2[%c0_13, %c0_14] : memref<32x32xbf16, #tpu.memory_space<vmem>>, vector<32x32xbf16>
    %cst_15 = arith.constant dense<0.000000e+00> : vector<8x32xf32>
    %33 = tpu.matmul %31, %32, %cst_15 {dimension_numbers = #tpu.dot_dimension_numbers<[1], [0], [0], [1], [0, 0, 1, 1], [], []>} : vector<8x32xbf16>, vector<32x32xbf16>, vector<8x32xf32> -> vector<8x32xf32>
    %c3 = arith.constant 3 : index
    %c0_16 = arith.constant 0 : index
    %34 = vector.load %arg4[%c3, %c0_16] : memref<16x128xf32, #tpu.memory_space<vmem>>, vector<1x32xf32>
    %35 = vector.broadcast %34 : vector<1x32xf32> to vector<8x32xf32>
    %36 = arith.addf %33, %35 : vector<8x32xf32>
    %cst_17 = arith.constant 0.000000e+00 : f32
    %37 = vector.broadcast %cst_17 : f32 to vector<8x32xf32>
    %38 = arith.maximumf %36, %37 : vector<8x32xf32>
    %cst_18 = arith.constant dense<0.000000e+00> : vector<32xf32>
    %39 = vector.multi_reduction <add>, %38, %cst_18 [0] : vector<8x32xf32> to vector<32xf32>
    %40 = vector.shape_cast %39 : vector<32xf32> to vector<1x32xf32>
    %cst_19 = arith.constant 8.000000e+00 : f32
    %41 = vector.broadcast %cst_19 : f32 to vector<1x32xf32>
    %42 = arith.divf %40, %41 : vector<1x32xf32>
    %43 = vector.broadcast %42 : vector<1x32xf32> to vector<8x32xf32>
    %44 = arith.subf %38, %43 : vector<8x32xf32>
    %45 = arith.mulf %44, %44 : vector<8x32xf32>
    %cst_20 = arith.constant dense<0.000000e+00> : vector<32xf32>
    %46 = vector.multi_reduction <add>, %45, %cst_20 [0] : vector<8x32xf32> to vector<32xf32>
    %47 = vector.shape_cast %46 : vector<32xf32> to vector<1x32xf32>
    %cst_21 = arith.constant 8.000000e+00 : f32
    %48 = vector.broadcast %cst_21 : f32 to vector<1x32xf32>
    %49 = arith.divf %47, %48 : vector<1x32xf32>
    %c4 = arith.constant 4 : index
    %c0_22 = arith.constant 0 : index
    %50 = vector.load %arg4[%c4, %c0_22] : memref<16x128xf32, #tpu.memory_space<vmem>>, vector<1x32xf32>
    %cst_23 = arith.constant 9.99999974E-6 : f32
    %51 = vector.broadcast %cst_23 : f32 to vector<1x32xf32>
    %52 = arith.addf %49, %51 : vector<1x32xf32>
    %53 = math.rsqrt %52 : vector<1x32xf32>
    %54 = arith.mulf %50, %53 : vector<1x32xf32>
    %c5 = arith.constant 5 : index
    %c0_24 = arith.constant 0 : index
    %55 = vector.load %arg4[%c5, %c0_24] : memref<16x128xf32, #tpu.memory_space<vmem>>, vector<1x32xf32>
    %56 = arith.mulf %54, %42 : vector<1x32xf32>
    %57 = arith.subf %55, %56 : vector<1x32xf32>
    %58 = vector.broadcast %54 : vector<1x32xf32> to vector<8x32xf32>
    %59 = arith.mulf %58, %38 : vector<8x32xf32>
    %60 = vector.broadcast %57 : vector<1x32xf32> to vector<8x32xf32>
    %61 = arith.addf %59, %60 : vector<8x32xf32>
    %62 = arith.truncf %61 : vector<8x32xf32> to vector<8x32xbf16>
    %c0_25 = arith.constant 0 : index
    %c0_26 = arith.constant 0 : index
    %63 = vector.load %arg3[%c0_25, %c0_26] : memref<32x16xbf16, #tpu.memory_space<vmem>>, vector<32x16xbf16>
    %cst_27 = arith.constant dense<0.000000e+00> : vector<8x16xf32>
    %64 = tpu.matmul %62, %63, %cst_27 {dimension_numbers = #tpu.dot_dimension_numbers<[1], [0], [0], [1], [0, 0, 1, 1], [], []>} : vector<8x32xbf16>, vector<32x16xbf16>, vector<8x16xf32> -> vector<8x16xf32>
    %c6 = arith.constant 6 : index
    %c0_28 = arith.constant 0 : index
    %65 = vector.load %arg4[%c6, %c0_28] : memref<16x128xf32, #tpu.memory_space<vmem>>, vector<1x16xf32>
    %66 = vector.broadcast %65 : vector<1x16xf32> to vector<8x16xf32>
    %67 = arith.addf %64, %66 : vector<8x16xf32>
    %cst_29 = arith.constant 0.000000e+00 : f32
    %68 = vector.broadcast %cst_29 : f32 to vector<8x16xf32>
    %69 = arith.maximumf %67, %68 : vector<8x16xf32>
    %cst_30 = arith.constant dense<0.000000e+00> : vector<16xf32>
    %70 = vector.multi_reduction <add>, %69, %cst_30 [0] : vector<8x16xf32> to vector<16xf32>
    %71 = vector.shape_cast %70 : vector<16xf32> to vector<1x16xf32>
    %cst_31 = arith.constant 8.000000e+00 : f32
    %72 = vector.broadcast %cst_31 : f32 to vector<1x16xf32>
    %73 = arith.divf %71, %72 : vector<1x16xf32>
    %74 = vector.broadcast %73 : vector<1x16xf32> to vector<8x16xf32>
    %75 = arith.subf %69, %74 : vector<8x16xf32>
    %76 = arith.mulf %75, %75 : vector<8x16xf32>
    %cst_32 = arith.constant dense<0.000000e+00> : vector<16xf32>
    %77 = vector.multi_reduction <add>, %76, %cst_32 [0] : vector<8x16xf32> to vector<16xf32>
    %78 = vector.shape_cast %77 : vector<16xf32> to vector<1x16xf32>
    %cst_33 = arith.constant 8.000000e+00 : f32
    %79 = vector.broadcast %cst_33 : f32 to vector<1x16xf32>
    %80 = arith.divf %78, %79 : vector<1x16xf32>
    %c7 = arith.constant 7 : index
    %c0_34 = arith.constant 0 : index
    %81 = vector.load %arg4[%c7, %c0_34] : memref<16x128xf32, #tpu.memory_space<vmem>>, vector<1x16xf32>
    %cst_35 = arith.constant 9.99999974E-6 : f32
    %82 = vector.broadcast %cst_35 : f32 to vector<1x16xf32>
    %83 = arith.addf %80, %82 : vector<1x16xf32>
    %84 = math.rsqrt %83 : vector<1x16xf32>
    %85 = arith.mulf %81, %84 : vector<1x16xf32>
    %c8 = arith.constant 8 : index
    %c0_36 = arith.constant 0 : index
    %86 = vector.load %arg4[%c8, %c0_36] : memref<16x128xf32, #tpu.memory_space<vmem>>, vector<1x16xf32>
    %87 = arith.mulf %85, %73 : vector<1x16xf32>
    %88 = arith.subf %86, %87 : vector<1x16xf32>
    %89 = vector.broadcast %85 : vector<1x16xf32> to vector<8x16xf32>
    %90 = arith.mulf %89, %69 : vector<8x16xf32>
    %91 = vector.broadcast %88 : vector<1x16xf32> to vector<8x16xf32>
    %92 = arith.addf %90, %91 : vector<8x16xf32>
    %c10 = arith.constant 10 : index
    %c0_37 = arith.constant 0 : index
    %93 = vector.load %arg4[%c10, %c0_37] : memref<16x128xf32, #tpu.memory_space<vmem>>, vector<1x16xf32>
    %c9 = arith.constant 9 : index
    %c0_38 = arith.constant 0 : index
    %94 = vector.load %arg4[%c9, %c0_38] : memref<16x128xf32, #tpu.memory_space<vmem>>, vector<1x1xf32>
    %95 = vector.broadcast %93 : vector<1x16xf32> to vector<8x16xf32>
    %96 = arith.mulf %92, %95 : vector<8x16xf32>
    %cst_39 = arith.constant dense<0.000000e+00> : vector<8xf32>
    %97 = vector.multi_reduction <add>, %96, %cst_39 [1] : vector<8x16xf32> to vector<8xf32>
    %98 = vector.shape_cast %97 : vector<8xf32> to vector<8x1xf32>
    %99 = vector.broadcast %94 : vector<1x1xf32> to vector<8x1xf32>
    %100 = arith.addf %98, %99 : vector<8x1xf32>
    %101 = vector.shape_cast %100 : vector<8x1xf32> to vector<8x1xf32>
    %102 = vector.broadcast %101 : vector<8x1xf32> to vector<8x128xf32>
    %c0_40 = arith.constant 0 : index
    %c0_41 = arith.constant 0 : index
    %103 = vector.load %arg5[%c0_40, %c0_41] : memref<8x128xf32, #tpu.memory_space<vmem>>, vector<8x128xf32>
    tpu.vector_store %arg5[%c0_40, %c0_41], %102 {strides = array<i32>} : memref<8x128xf32, #tpu.memory_space<vmem>>, vector<8x128xf32>,
    return
  }
}

</mosaic_0001>

<llo_original>
// kernel: tpu_custom_call.1
$region0: #{tpu_custom_call.1}
  #allocation0 [shape = 'u32[]', space=smem, size = 0x4, offset = 0x4, fixed_abs, tag = 'smem constant byte address 0x4 - core index']
  #allocation1 [shape = 'u32[144,128]{1,0:T(1,128)}', space=vmem, size = 0x12000, scoped, tag = 'internal scratch']
  %s0 = inlined_call_operand.vmem [shape: bf16[8,32], index: 0, kind: input, shape index: {}]
  %s1 = inlined_call_operand.vmem [shape: bf16[32,32], index: 1, kind: input, shape index: {}]
  %s2 = inlined_call_operand.hbm [shape: bf16[32,32], index: 2, kind: input, shape index: {}]
  %s3 = inlined_call_operand.vmem [shape: bf16[32,16], index: 3, kind: input, shape index: {}]
  %s4 = inlined_call_operand.hbm [shape: f32[16,128], index: 4, kind: input, shape index: {}]
  %s5 = inlined_call_operand.hbm [shape: f32[8,128], index: 5, kind: output, shape index: {}]
  %s6 = sld [smem:[#allocation0]]
  $region38: #{tpu_custom_call.1} parent=0
    _
  %s8 = ssub.s32 1, %s6
  %s9 = scalar_select 0, %s8, %s6
  $region1: #{tpu_custom_call.1} parent=0
    #allocation2 [shape = 'u8[8192]{0}', space=vmem, size = 0x2000, scoped, tag = 'input window, operand 2, single buffered']
    #allocation3 [shape = 's32[1]{0}', space=sflag, size = 0x4, scoped, tag = 'scoped memory for tpu_custom_call.1']
    #allocation4 [shape = 's32[1]{0}', space=sflag, size = 0x4, scoped, tag = 'scoped memory for tpu_custom_call.1']
    #allocation5 [shape = 'u8[8192]{0}', space=vmem, size = 0x2000, scoped, tag = 'input window, operand 4, single buffered']
    #allocation6 [shape = 's32[1]{0}', space=sflag, size = 0x4, scoped, tag = 'scoped memory for tpu_custom_call.1']
    #allocation7 [shape = 'u8[4096]{0}', space=vmem, size = 0x1000, scoped, tag = 'output window, operand 0, single buffered']
    %10 = vsyncpa [#allocation3], 0
    %11 = vsyncpa [#allocation6], 0
    %12 = vsyncpa [#allocation4], 0
    // Predicated region
    $region2: #{tpu_custom_call.1} parent=1 // pred_check
      _
    $region3: #{tpu_custom_call.1} parent=1 // pred_check_branch
      %14 = sbr.rel (0) target = $region5
    $region4: #{tpu_custom_call.1} parent=1 // pred_region
      _
    $region5: #{tpu_custom_call.1} parent=1 // pred_fallthru
      _
    // Predicated region
    $region6: #{tpu_custom_call.1} parent=1 // pred_check
      _
    $region7: #{tpu_custom_call.1} parent=1 // pred_check_branch
      %16 = sbr.rel (0) target = $region9
    $region8: #{tpu_custom_call.1} parent=1 // pred_region
      _
    $region9: #{tpu_custom_call.1} parent=1 // pred_fallthru
      _
    // Predicated region
    $region10: #{tpu_custom_call.1} parent=1 // pred_check
      _
    $region11: #{tpu_custom_call.1} parent=1 // pred_check_branch
      %18 = sbr.rel (0) target = $region13
    $region12: #{tpu_custom_call.1} parent=1 // pred_region
      %s20 = ssub.s32 256, 256
      %21 = vsyncadd [#allocation3], %s20
      %s22 = sshll.u32 [#allocation2], 4
      %s23 = int_to_ptr.vmem [resolvable:$true] %s22
      %28 = dma.hbm_to_vmem [thread:$0]  %s2, 256, %s23, [#allocation3], 64, 64, 4
    $region13: #{tpu_custom_call.1} parent=1 // pred_fallthru
      _
    // Predicated region
    $region14: #{tpu_custom_call.1} parent=1 // pred_check
      _
    $region15: #{tpu_custom_call.1} parent=1 // pred_check_branch
      %30 = sbr.rel (0) target = $region17
    $region16: #{tpu_custom_call.1} parent=1 // pred_region
      _
    $region17: #{tpu_custom_call.1} parent=1 // pred_fallthru
      _
    // Predicated region
    $region18: #{tpu_custom_call.1} parent=1 // pred_check
      _
    $region19: #{tpu_custom_call.1} parent=1 // pred_check_branch
      %32 = sbr.rel (0) target = $region21
    $region20: #{tpu_custom_call.1} parent=1 // pred_region
      %s34 = ssub.s32 256, 256
      %35 = vsyncadd [#allocation6], %s34
      %s36 = sshll.u32 [#allocation5], 4
      %s37 = int_to_ptr.vmem [resolvable:$true] %s36
      %42 = dma.hbm_to_vmem [thread:$0]  %s4, 256, %s37, [#allocation6], 128, 128, 8
    $region21: #{tpu_custom_call.1} parent=1 // pred_fallthru
      _
    // Predicated region
    $region22: #{tpu_custom_call.1} parent=1 // pred_check
      _
    $region23: #{tpu_custom_call.1} parent=1 // pred_check_branch
      %44 = sbr.rel (0) target = $region25
    $region24: #{tpu_custom_call.1} parent=1 // pred_region
      %45 = dma.done [#allocation3], 256
    $region25: #{tpu_custom_call.1} parent=1 // pred_fallthru
      _
    // Predicated region
    $region26: #{tpu_custom_call.1} parent=1 // pred_check
      _
    $region27: #{tpu_custom_call.1} parent=1 // pred_check_branch
      %47 = sbr.rel (0) target = $region29
    $region28: #{tpu_custom_call.1} parent=1 // pred_region
      %48 = dma.done [#allocation6], 256
    $region29: #{tpu_custom_call.1} parent=1 // pred_fallthru
      _
    %v50 = vld [vmem:[%s0] sm:$0xf]
    %v51 = vld [vmem:[%s1] sm:$0xf]
    %v52 = vld [vmem:[%s1 + $0x4] sm:$0xf]
    %v53 = vld [vmem:[%s1 + $0x8] sm:$0xf]
    %v54 = vld [vmem:[%s1 + $0xc] sm:$0xf]
    %v55 = vld [vmem:[#allocation5] sm:$0x1]
    %v56 = vlaneseq
    %v57 = vshrl.u32 %v56, 7
    %v58 = vsub.s32 0, %v57
    %v59 = vrot.slane %v55, %v58
    %v64 = vunpack.c.l.b16 %v51
    %v65 = vunpack.c.l.b16 %v52
    %v66 = vunpack.c.l.b16 %v53
    %v67 = vunpack.c.l.b16 %v54
    %v68 = vpack.c.b16 %v65, %v64
    %v69 = vpack.c.b16 %v67, %v66
    %vm72 = vcmask 261120
    %v74 = vsel %vm72, %v50, 0
    %76 = vmatprep.subr.bf16.mxu0 0
    %77 = vmatpush1.bf16.msra.mxu0 0
    %78 = vmatprep.subr.bf16.mxu0 0
    %79 = vmatpush1.bf16.msra.mxu0 0
    %80 = vmatprep.subr.bf16.mxu0 0
    %81 = vmatpush1.bf16.msra.mxu0 0
    %82 = vmatprep.subr.bf16.mxu0 0
    %83 = vmatpush1.bf16.msra.mxu0 0
    %84 = vmatprep.subr.bf16.mxu0 0
    %85 = vmatpush1.bf16.msra.mxu0 0
    %86 = vmatprep.subr.bf16.mxu0 0
    %87 = vmatpush1.bf16.msra.mxu0 0
    %88 = vmatprep.subr.bf16.mxu0 0
    %89 = vmatpush1.bf16.msra.mxu0 %v69
    %90 = vmatprep.subr.bf16.mxu0 0
    %91 = vmatpush1.bf16.msra.mxu0 %v68
    %92 = vmatprep.subr.bf16.mxu0 0
    %93 = vmatpush2.bf16.msra.mxu0 0
    %94 = vmatprep.subr.bf16.mxu0 0
    %95 = vmatpush2.bf16.msra.mxu0 0
    %96 = vmatprep.subr.bf16.mxu0 0
    %97 = vmatpush2.bf16.msra.mxu0 0
    %98 = vmatprep.subr.bf16.mxu0 0
    %99 = vmatpush2.bf16.msra.mxu0 0
    %100 = vmatprep.subr.bf16.mxu0 0
    %101 = vmatpush2.bf16.msra.mxu0 0
    %102 = vmatprep.subr.bf16.mxu0 0
    %103 = vmatpush2.bf16.msra.mxu0 0
    %104 = vmatprep.subr.bf16.mxu0 0
    %105 = vmatpush2.bf16.msra.mxu0 0
    %106 = vmatprep.subr.bf16.mxu0 0
    %107 = vmatpush2.bf16.msra.mxu0 0
    %108 = vmatprep.mubr.bf16.mxu0 0
    %109 = vmatmul.mubr.bf16.gmra.mxu0 %v74
    %v110 = vpop.f32.mrf.mxu0
    %v111 = vadd.f32 %v59, %v110
    %v112 = vpop.f32.mrf.mxu0
    %v113 = vpop.f32.mrf.mxu0
    %v114 = vpop.f32.mrf.mxu0
    %115 = vdwg.mxu0
    %v116 = vmax.f32 %v111, 0.0
    %v117 = vsel %vm72, %v116, 0.0
    %v118 = vrot.slane %v117, 4
    %v119 = vadd.f32 %v117, %v118
    %v120 = vrot.slane %v119, 2
    %v121 = vadd.f32 %v119, %v120
    %v122 = vrot.slane %v121, 1
    %v123 = vadd.f32 %v121, %v122
    %v124 = vrcp.pop 8.0
    %v125 = vmul.f32 %v123, %v124
    %v126 = vsub.f32 %v116, %v125
    %v127 = vmul.f32 %v126, %v126
    %v128 = vsel %vm72, %v127, 0.0
    %v129 = vrot.slane %v128, 4
    %v130 = vadd.f32 %v128, %v129
    %v131 = vrot.slane %v130, 2
    %v132 = vadd.f32 %v130, %v131
    %v133 = vrot.slane %v132, 1
    %v134 = vadd.f32 %v132, %v133
    %v135 = vmul.f32 %v134, %v124
    %v136 = vld [vmem:[#allocation5 + $0x1] sm:$0x1]
    %v137 = vadd.f32 %v135, 1e-05
    %v138 = vrsqrt.pop %v137
    %v139 = vmul.f32 %v136, %v138
    %v140 = vld [vmem:[#allocation5 + $0x2] sm:$0x1]
    %v141 = vmul.f32 %v139, %v125
    %v142 = vsub.f32 %v140, %v141
    %v143 = vlaneseq
    %v144 = vshrl.u32 %v143, 7
    %v145 = vsub.s32 0, %v144
    %v146 = vrot.slane %v139, %v145
    %v147 = vmul.f32 %v146, %v116
    %v148 = vlaneseq
    %v149 = vshrl.u32 %v148, 7
    %v150 = vsub.s32 0, %v149
    %v151 = vrot.slane %v142, %v150
    %v152 = vadd.f32 %v147, %v151
    %v153 = vpack.c.bf16 %v152, %v152
    %v154 = vld [vmem:[#allocation2] sm:$0xf]
    %v155 = vld [vmem:[#allocation2 + $0x4] sm:$0xf]
    %v156 = vld [vmem:[#allocation2 + $0x8] sm:$0xf]
    %v157 = vld [vmem:[#allocation2 + $0xc] sm:$0xf]
    %v158 = vld [vmem:[#allocation5 + $0x3] sm:$0x1]
    %v159 = vlaneseq
    %v160 = vshrl.u32 %v159, 7
    %v161 = vsub.s32 0, %v160
    %v162 = vrot.slane %v158, %v161
    %v167 = vunpack.c.l.b16 %v154
    %v168 = vunpack.c.l.b16 %v155
    %v169 = vunpack.c.l.b16 %v156
    %v170 = vunpack.c.l.b16 %v157
    %v171 = vpack.c.b16 %v168, %v167
    %v172 = vpack.c.b16 %v170, %v169
    %v176 = vsel %vm72, %v153, 0
    %178 = vmatprep.subr.bf16.mxu0 0
    %179 = vmatpush1.bf16.msra.mxu0 0
    %180 = vmatprep.subr.bf16.mxu0 0
    %181 = vmatpush1.bf16.msra.mxu0 0
    %182 = vmatprep.subr.bf16.mxu0 0
    %183 = vmatpush1.bf16.msra.mxu0 0
    %184 = vmatprep.subr.bf16.mxu0 0
    %185 = vmatpush1.bf16.msra.mxu0 0
    %186 = vmatprep.subr.bf16.mxu0 0
    %187 = vmatpush1.bf16.msra.mxu0 0
    %188 = vmatprep.subr.bf16.mxu0 0
    %189 = vmatpush1.bf16.msra.mxu0 0
    %190 = vmatprep.subr.bf16.mxu0 0
    %191 = vmatpush1.bf16.msra.mxu0 %v172
    %192 = vmatprep.subr.bf16.mxu0 0
    %193 = vmatpush1.bf16.msra.mxu0 %v171
    %194 = vmatprep.subr.bf16.mxu0 0
    %195 = vmatpush2.bf16.msra.mxu0 0
    %196 = vmatprep.subr.bf16.mxu0 0
    %197 = vmatpush2.bf16.msra.mxu0 0
    %198 = vmatprep.subr.bf16.mxu0 0
    %199 = vmatpush2.bf16.msra.mxu0 0
    %200 = vmatprep.subr.bf16.mxu0 0
    %201 = vmatpush2.bf16.msra.mxu0 0
    %202 = vmatprep.subr.bf16.mxu0 0
    %203 = vmatpush2.bf16.msra.mxu0 0
    %204 = vmatprep.subr.bf16.mxu0 0
    %205 = vmatpush2.bf16.msra.mxu0 0
    %206 = vmatprep.subr.bf16.mxu0 0
    %207 = vmatpush2.bf16.msra.mxu0 0
    %208 = vmatprep.subr.bf16.mxu0 0
    %209 = vmatpush2.bf16.msra.mxu0 0
    %210 = vmatprep.mubr.bf16.mxu0 0
    %211 = vmatmul.mubr.bf16.gmra.mxu0 %v176
    %v212 = vpop.f32.mrf.mxu0
    %v213 = vadd.f32 %v162, %v212
    %v214 = vpop.f32.mrf.mxu0
    %v215 = vpop.f32.mrf.mxu0
    %v216 = vpop.f32.mrf.mxu0
    %217 = vdwg.mxu0
    %v218 = vmax.f32 %v213, 0.0
    %v219 = vsel %vm72, %v218, 0.0
    %v220 = vrot.slane %v219, 4
    %v221 = vadd.f32 %v219, %v220
    %v222 = vrot.slane %v221, 2
    %v223 = vadd.f32 %v221, %v222
    %v224 = vrot.slane %v223, 1
    %v225 = vadd.f32 %v223, %v224
    %v226 = vmul.f32 %v225, %v124
    %v227 = vsub.f32 %v218, %v226
    %v228 = vmul.f32 %v227, %v227
    %v229 = vsel %vm72, %v228, 0.0
    %v230 = vrot.slane %v229, 4
    %v231 = vadd.f32 %v229, %v230
    %v232 = vrot.slane %v231, 2
    %v233 = vadd.f32 %v231, %v232
    %v234 = vrot.slane %v233, 1
    %v235 = vadd.f32 %v233, %v234
    %v236 = vmul.f32 %v235, %v124
    %v237 = vld [vmem:[#allocation5 + $0x4] sm:$0x1]
    %v238 = vadd.f32 %v236, 1e-05
    %v239 = vrsqrt.pop %v238
    %v240 = vmul.f32 %v237, %v239
    %v241 = vld [vmem:[#allocation5 + $0x5] sm:$0x1]
    %v242 = vmul.f32 %v240, %v226
    %v243 = vsub.f32 %v241, %v242
    %v244 = vlaneseq
    %v245 = vshrl.u32 %v244, 7
    %v246 = vsub.s32 0, %v245
    %v247 = vrot.slane %v240, %v246
    %v248 = vmul.f32 %v247, %v218
    %v249 = vlaneseq
    %v250 = vshrl.u32 %v249, 7
    %v251 = vsub.s32 0, %v250
    %v252 = vrot.slane %v243, %v251
    %v253 = vadd.f32 %v248, %v252
    %v254 = vpack.c.bf16 %v253, %v253
    %v255 = vld [vmem:[%s3] sm:$0xf]
    %v256 = vld [vmem:[%s3 + $0x4] sm:$0xf]
    %v257 = vld [vmem:[%s3 + $0x8] sm:$0xf]
    %v258 = vld [vmem:[%s3 + $0xc] sm:$0xf]
    %v259 = vld [vmem:[#allocation5 + $0x6] sm:$0x1]
    %v260 = vlaneseq
    %v261 = vshrl.u32 %v260, 7
    %v262 = vsub.s32 0, %v261
    %v263 = vrot.slane %v259, %v262
    %v268 = vunpack.c.l.b16 %v255
    %v269 = vunpack.c.l.b16 %v256
    %v270 = vunpack.c.l.b16 %v257
    %v271 = vunpack.c.l.b16 %v258
    %v272 = vpack.c.b16 %v269, %v268
    %v273 = vpack.c.b16 %v271, %v270
    %v277 = vsel %vm72, %v254, 0
    %279 = vmatprep.subr.bf16.mxu0 0
    %280 = vmatpush1.bf16.msra.mxu0 0
    %281 = vmatprep.subr.bf16.mxu0 0
    %282 = vmatpush1.bf16.msra.mxu0 0
    %283 = vmatprep.subr.bf16.mxu0 0
    %284 = vmatpush1.bf16.msra.mxu0 0
    %285 = vmatprep.subr.bf16.mxu0 0
    %286 = vmatpush1.bf16.msra.mxu0 0
    %287 = vmatprep.subr.bf16.mxu0 0
    %288 = vmatpush1.bf16.msra.mxu0 0
    %289 = vmatprep.subr.bf16.mxu0 0
    %290 = vmatpush1.bf16.msra.mxu0 0
    %291 = vmatprep.subr.bf16.mxu0 0
    %292 = vmatpush1.bf16.msra.mxu0 %v273
    %293 = vmatprep.subr.bf16.mxu0 0
    %294 = vmatpush1.bf16.msra.mxu0 %v272
    %295 = vmatprep.subr.bf16.mxu0 0
    %296 = vmatpush2.bf16.msra.mxu0 0
    %297 = vmatprep.subr.bf16.mxu0 0
    %298 = vmatpush2.bf16.msra.mxu0 0
    %299 = vmatprep.subr.bf16.mxu0 0
    %300 = vmatpush2.bf16.msra.mxu0 0
    %301 = vmatprep.subr.bf16.mxu0 0
    %302 = vmatpush2.bf16.msra.mxu0 0
    %303 = vmatprep.subr.bf16.mxu0 0
    %304 = vmatpush2.bf16.msra.mxu0 0
    %305 = vmatprep.subr.bf16.mxu0 0
    %306 = vmatpush2.bf16.msra.mxu0 0
    %307 = vmatprep.subr.bf16.mxu0 0
    %308 = vmatpush2.bf16.msra.mxu0 0
    %309 = vmatprep.subr.bf16.mxu0 0
    %310 = vmatpush2.bf16.msra.mxu0 0
    %311 = vmatprep.mubr.bf16.mxu0 0
    %312 = vmatmul.mubr.bf16.gmra.mxu0 %v277
    %v313 = vpop.f32.mrf.mxu0
    %v314 = vadd.f32 %v263, %v313
    %v315 = vpop.f32.mrf.mxu0
    %v316 = vpop.f32.mrf.mxu0
    %v317 = vpop.f32.mrf.mxu0
    %318 = vdwg.mxu0
    %v319 = vmax.f32 %v314, 0.0
    %vm320 = vcmask 130048
    %v321 = vsel %vm320, %v319, 0.0
    %v322 = vrot.slane %v321, 4
    %v323 = vadd.f32 %v321, %v322
    %v324 = vrot.slane %v323, 2
    %v325 = vadd.f32 %v323, %v324
    %v326 = vrot.slane %v325, 1
    %v327 = vadd.f32 %v325, %v326
    %v328 = vmul.f32 %v327, %v124
    %v329 = vsub.f32 %v319, %v328
    %v330 = vmul.f32 %v329, %v329
    %v331 = vsel %vm320, %v330, 0.0
    %v332 = vrot.slane %v331, 4
    %v333 = vadd.f32 %v331, %v332
    %v334 = vrot.slane %v333, 2
    %v335 = vadd.f32 %v333, %v334
    %v336 = vrot.slane %v335, 1
    %v337 = vadd.f32 %v335, %v336
    %v338 = vmul.f32 %v337, %v124
    %v339 = vld [vmem:[#allocation5 + $0x7] sm:$0x1]
    %v340 = vadd.f32 %v338, 1e-05
    %v341 = vrsqrt.pop %v340
    %v342 = vmul.f32 %v339, %v341
    %v343 = vld [vmem:[#allocation5 + $0x8] sm:$0x1]
    %v344 = vmul.f32 %v342, %v328
    %v345 = vsub.f32 %v343, %v344
    %v346 = vlaneseq
    %v347 = vshrl.u32 %v346, 7
    %v348 = vsub.s32 0, %v347
    %v349 = vrot.slane %v342, %v348
    %v350 = vmul.f32 %v349, %v319
    %v351 = vlaneseq
    %v352 = vshrl.u32 %v351, 7
    %v353 = vsub.s32 0, %v352
    %v354 = vrot.slane %v345, %v353
    %v355 = vadd.f32 %v350, %v354
    %v356 = vld [vmem:[#allocation5 + $0xa] sm:$0x1]
    %v357 = vld [vmem:[#allocation5 + $0x9] sm:$0x1]
    %v358 = vlaneseq
    %v359 = vshrl.u32 %v358, 7
    %v360 = vsub.s32 0, %v359
    %v361 = vrot.slane %v356, %v360
    %v362 = vmul.f32 %v355, %v361
    %v363 = vsel %vm320, %v362, 0.0
    %364 = vadd.xlane.f32.xlu0 %v363
    %v365 = vpop.xlane.xlu0 %364
    %v366 = vlaneseq
    %v367 = vshrl.u32 %v366, 7
    %v368 = vsub.s32 0, %v367
    %v369 = vrot.slane %v357, %v368
    %v370 = vadd.f32 %v365, %v369
    %372 = vset.pattern.permute.xlu0 0
    %373 = vperm.xlu0 %372, %v370
    %v374 = vpop.permute.xlu0 %373
    %376 = vst [vmem:[#allocation7] sm:$0xff] %v374
    // Predicated region
    $region30: #{tpu_custom_call.1} parent=1 // pred_check
      _
    $region31: #{tpu_custom_call.1} parent=1 // pred_check_branch
      %378 = sbr.rel (0) target = $region33
    $region32: #{tpu_custom_call.1} parent=1 // pred_region
      %s380 = ssub.s32 128, 128
      %381 = vsyncadd [#allocation4], %s380
      %s383 = sshll.u32 [#allocation7], 4
      %s384 = int_to_ptr.vmem [resolvable:$true] %s383
      %386 = dma.vmem_to_hbm [thread:$0]  %s384, 128, %s5, [#allocation4]
    $region33: #{tpu_custom_call.1} parent=1 // pred_fallthru
      _
    // Predicated region
    $region34: #{tpu_custom_call.1} parent=1 // pred_check
      _
    $region35: #{tpu_custom_call.1} parent=1 // pred_check_branch
      %388 = sbr.rel (0) target = $region37
    $region36: #{tpu_custom_call.1} parent=1 // pred_region
      %389 = dma.done [#allocation4], 128
    $region37: #{tpu_custom_call.1} parent=1 // pred_fallthru
      _
    %390 = vsyncpa [#allocation3], 1
    %391 = vsyncpa [#allocation6], 1
    %392 = vsyncpa [#allocation4], 1

</llo_original>
